<compile_context>
chip_gen: v5e
topology: v5e:2x2
jax: 0.10.0
libtpu: 0.0.40
codegen_flags: <defaults>
</compile_context>

<pallas_src>
import functools

import jax
import jax.numpy as jnp
from jax import lax
from jax.experimental import pallas as pl
from jax.experimental.pallas import tpu as pltpu

LANE = 128
SUBLANE = 8
CHUNK = 128  # rows per in-kernel accumulation chunk (~16 vregs of temporaries)


def _sse_kernel(*refs, n_preds, blk, steps, valid_last, inv_total):
    """Streamed sum-of-squared-error; finalizes the means in-kernel."""
    pred_refs = refs[:n_preds]
    tgt_ref = refs[n_preds]
    out_ref = refs[n_preds + 1]          # SMEM (n_preds,) f32: final means
    acc_refs = refs[n_preds + 2:]        # VMEM (8, 128) f32 accumulators

    step = pl.program_id(0)
    ragged = valid_last != blk           # static: last block only partly valid?

    @pl.when(step == 0)
    def _():
        for acc in acc_refs:
            acc[...] = jnp.zeros(acc.shape, jnp.float32)

    if ragged:
        # Rows of real data inside the current block (static everywhere but the
        # last grid step).  OOB rows of the last block hold garbage -> masked.
        valid = jnp.where(step == steps - 1, valid_last, blk)

    def fold_add(acc, dd):
        # Fold (size, 128) -> (8, 128) with pure vreg-wise VPU adds; the
        # cross-lane reduce is deferred to the last-step finalize (XLU slot).
        size = dd.shape[0]
        full = (size // SUBLANE) * SUBLANE
        if full:
            acc[...] += dd[:full].reshape(-1, SUBLANE, LANE).sum(axis=0)
        tail = size - full
        if tail:
            acc[pl.ds(0, tail), :] = acc[pl.ds(0, tail), :] + dd[full:]

    def accumulate(base, size):
        tgt = tgt_ref[pl.ds(base, size), :].astype(jnp.float32)
        for pred_ref, acc in zip(pred_refs, acc_refs):
            d = pred_ref[pl.ds(base, size), :].astype(jnp.float32) - tgt
            dd = d * d
            if ragged:
                rid = base + lax.broadcasted_iota(jnp.int32, (size, LANE), 0)
                dd = jnp.where(rid < valid, dd, 0.0)
            fold_add(acc, dd)

    n_chunks, rem = divmod(blk, CHUNK)
    if n_chunks:
        def body(c, carry):
            accumulate(pl.multiple_of(c * CHUNK, CHUNK), CHUNK)
            return carry
        lax.fori_loop(0, n_chunks, body, 0)
    if rem:
        accumulate(n_chunks * CHUNK, rem)

    @pl.when(step == steps - 1)
    def _():
        for i, acc in enumerate(acc_refs):
            out_ref[i] = jnp.sum(acc[...]) * inv_total


def mse_means(preds, targets, *, block_rows=1024):
    """mean((p - targets)**2) for every p in `preds`, fused into one Pallas pass."""
    preds = list(preds)
    n_preds = len(preds)
    assert n_preds >= 1
    for p in preds:
        assert p.shape == targets.shape, (p.shape, targets.shape)

    total = int(targets.size)
    itemsize = jnp.dtype(targets.dtype).itemsize

    flats = [p.reshape(-1) for p in (*preds, targets)]
    pad = (-total) % LANE
    if pad:
        # Rare non-128-aligned path: one small pad copy.  Padded zeros
        # contribute (0-0)^2 = 0; the divisor stays the true element count.
        flats = [jnp.pad(f, (0, pad)) for f in flats]
    rows = (total + pad) // LANE
    slabs = [f.reshape(rows, LANE) for f in flats]   # free reshape, lane-dense

    block_rows = max(SUBLANE, (block_rows // SUBLANE) * SUBLANE)
    blk = rows if rows <= block_rows else block_rows  # full dim or multiple of 8
    steps = pl.cdiv(rows, blk)
    valid_last = rows - (steps - 1) * blk             # real rows in last block

    kernel = functools.partial(
        _sse_kernel, n_preds=n_preds, blk=blk, steps=steps,
        valid_last=valid_last, inv_total=1.0 / float(total))

    means = pl.pallas_call(
        kernel,
        out_shape=jax.ShapeDtypeStruct((n_preds,), jnp.float32),
        grid=(steps,),
        in_specs=[pl.BlockSpec((blk, LANE), lambda i: (i, 0))] * (n_preds + 1),
        out_specs=pl.BlockSpec(memory_space=pltpu.MemorySpace.SMEM),
        scratch_shapes=[pltpu.VMEM((SUBLANE, LANE), jnp.float32)
                        for _ in range(n_preds)],
        compiler_params=pltpu.CompilerParams(
            dimension_semantics=("arbitrary",)),
        cost_estimate=pl.CostEstimate(
            flops=3 * n_preds * total,
            transcendentals=0,
            bytes_accessed=(n_preds + 1) * total * itemsize + n_preds * 4),
    )(*slabs)
    return [means[i] for i in range(n_preds)]


def nerf_loss(inputs, targets):
    """JAX/Pallas equivalent of NerfLoss.forward: (total_loss, loss_dict)."""
    loss_dict = {}
    if "rgb_fine" in inputs:
        coarse, fine = mse_means([inputs["rgb_coarse"], inputs["rgb_fine"]], targets)
        loss_dict["coarse_color"] = coarse
        loss_dict["fine_color"] = fine
    else:
        (coarse,) = mse_means([inputs["rgb_coarse"]], targets)
        loss_dict["coarse_color"] = coarse
    loss = sum(loss_dict.values())
    return loss, loss_dict


if __name__ == "__main__":
    key = jax.random.PRNGKey(0)
    k1, k2, k3, k4, k5 = jax.random.split(key, 5)

    # Typical small NeRF ray batch: (N_rays, 3) RGB.
    n_rays, channels = 256, 3
    rgb_coarse = jax.random.uniform(k1, (n_rays, channels), dtype=jnp.float32)
    rgb_fine = jax.random.uniform(k2, (n_rays, channels), dtype=jnp.float32)
    targets = jax.random.uniform(k3, (n_rays, channels), dtype=jnp.float32)

    inputs = {"rgb_coarse": rgb_coarse, "rgb_fine": rgb_fine}
    loss, loss_dict = nerf_loss(inputs, targets)
    jax.block_until_ready(loss)

    ref_coarse = jnp.mean((rgb_coarse - targets) ** 2)
    ref_fine = jnp.mean((rgb_fine - targets) ** 2)
    assert jnp.allclose(loss_dict["coarse_color"], ref_coarse, atol=1e-5, rtol=1e-5)
    assert jnp.allclose(loss_dict["fine_color"], ref_fine, atol=1e-5, rtol=1e-5)
    assert jnp.allclose(loss, ref_coarse + ref_fine, atol=1e-5, rtol=1e-5)

    # Coarse-only path (no 'rgb_fine').
    loss_c, ld_c = nerf_loss({"rgb_coarse": rgb_coarse}, targets)
    jax.block_until_ready(loss_c)
    assert jnp.allclose(loss_c, ref_coarse, atol=1e-5, rtol=1e-5)
    assert "fine_color" not in ld_c

    # Aligned, single-step, multi-chunk path (rows=384 -> fori_loop over chunks).
    a = jax.random.uniform(k4, (16384, 3), dtype=jnp.float32)
    b = jax.random.uniform(k5, (16384, 3), dtype=jnp.float32)
    (m1,) = mse_means([a], b)
    jax.block_until_ready(m1)
    assert jnp.allclose(m1, jnp.mean((a - b) ** 2), atol=1e-5, rtol=1e-5)

    # Aligned, multi-step, ragged-last-block path (rows=213, blk=64, steps=4).
    c = jax.random.uniform(k4, (9088, 3), dtype=jnp.float32)
    (m2,) = mse_means([c], jnp.zeros_like(c), block_rows=64)
    jax.block_until_ready(m2)
    assert jnp.allclose(m2, jnp.mean(c ** 2), atol=1e-5, rtol=1e-5)

    # Non-128-aligned total -> tiny pad fallback (total=3000, rows=24).
    d = jax.random.uniform(k5, (1000, 3), dtype=jnp.float32)
    (m3,) = mse_means([d], jnp.zeros_like(d))
    jax.block_until_ready(m3)
    assert jnp.allclose(m3, jnp.mean(d ** 2), atol=1e-5, rtol=1e-5)

    print("KERNEL_OK")
</pallas_src>

<mosaic_0001>
module attributes {stable_mosaic.version = 11 : i64} {
  func.func @_sse_kernel(%arg0: i32, %arg1: memref<6x128xf32, #tpu.memory_space<vmem>>, %arg2: memref<6x128xf32, #tpu.memory_space<vmem>>, %arg3: memref<6x128xf32, #tpu.memory_space<vmem>>, %arg4: memref<2xf32, #tpu.memory_space<smem>>, %arg5: memref<8x128xf32, #tpu.memory_space<vmem>>, %arg6: memref<8x128xf32, #tpu.memory_space<vmem>>) attributes {dimension_semantics = [#tpu.dimension_semantics<arbitrary>], iteration_bounds = array<i64: 1>, scalar_prefetch = 0 : i64, scratch_operands = 2 : i64, tpu.core_type = #tpu.core_type<tc>, window_params = [{transform_indices = @transform_0, window_bounds = array<i64: 6, 128>}, {transform_indices = @transform_1, window_bounds = array<i64: 6, 128>}, {transform_indices = @transform_2, window_bounds = array<i64: 6, 128>}, {transform_indices = @transform_3, window_bounds = array<i64: 2>}]} {
    %c0_i32 = arith.constant 0 : i32
    %0 = arith.cmpi eq, %arg0, %c0_i32 : i32
    %1 = arith.extui %0 : i1 to i32
    %c0_i32_0 = arith.constant 0 : i32
    %2 = arith.cmpi ne, %1, %c0_i32_0 : i32
    scf.if %2 {
      %cst = arith.constant 0.000000e+00 : f32
      %19 = vector.broadcast %cst : f32 to vector<8x128xf32>
      %c0_16 = arith.constant 0 : index
      %c0_17 = arith.constant 0 : index
      %20 = vector.load %arg5[%c0_16, %c0_17] : memref<8x128xf32, #tpu.memory_space<vmem>>, vector<8x128xf32>
      tpu.vector_store %arg5[%c0_16, %c0_17], %19 {strides = array<i32>} : memref<8x128xf32, #tpu.memory_space<vmem>>, vector<8x128xf32>,
      %cst_18 = arith.constant 0.000000e+00 : f32
      %21 = vector.broadcast %cst_18 : f32 to vector<8x128xf32>
      %c0_19 = arith.constant 0 : index
      %c0_20 = arith.constant 0 : index
      %22 = vector.load %arg6[%c0_19, %c0_20] : memref<8x128xf32, #tpu.memory_space<vmem>>, vector<8x128xf32>
      tpu.vector_store %arg6[%c0_19, %c0_20], %21 {strides = array<i32>} : memref<8x128xf32, #tpu.memory_space<vmem>>, vector<8x128xf32>,
    } else {
    }
    %c0 = arith.constant 0 : index
    %c0_1 = arith.constant 0 : index
    %3 = vector.load %arg3[%c0, %c0_1] : memref<6x128xf32, #tpu.memory_space<vmem>>, vector<6x128xf32>
    %c0_2 = arith.constant 0 : index
    %c0_3 = arith.constant 0 : index
    %4 = vector.load %arg1[%c0_2, %c0_3] : memref<6x128xf32, #tpu.memory_space<vmem>>, vector<6x128xf32>
    %5 = arith.subf %4, %3 : vector<6x128xf32>
    %6 = arith.mulf %5, %5 : vector<6x128xf32>
    %c0_4 = arith.constant 0 : index
    %c0_5 = arith.constant 0 : index
    %7 = vector.load %arg5[%c0_4, %c0_5] : memref<8x128xf32, #tpu.memory_space<vmem>>, vector<6x128xf32>
    %8 = arith.addf %7, %6 : vector<6x128xf32>
    %c0_6 = arith.constant 0 : index
    %c0_7 = arith.constant 0 : index
    %9 = vector.load %arg5[%c0_6, %c0_7] : memref<8x128xf32, #tpu.memory_space<vmem>>, vector<6x128xf32>
    tpu.vector_store %arg5[%c0_6, %c0_7], %8 {strides = array<i32>} : memref<8x128xf32, #tpu.memory_space<vmem>>, vector<6x128xf32>,
    %c0_8 = arith.constant 0 : index
    %c0_9 = arith.constant 0 : index
    %10 = vector.load %arg2[%c0_8, %c0_9] : memref<6x128xf32, #tpu.memory_space<vmem>>, vector<6x128xf32>
    %11 = arith.subf %10, %3 : vector<6x128xf32>
    %12 = arith.mulf %11, %11 : vector<6x128xf32>
    %c0_10 = arith.constant 0 : index
    %c0_11 = arith.constant 0 : index
    %13 = vector.load %arg6[%c0_10, %c0_11] : memref<8x128xf32, #tpu.memory_space<vmem>>, vector<6x128xf32>
    %14 = arith.addf %13, %12 : vector<6x128xf32>
    %c0_12 = arith.constant 0 : index
    %c0_13 = arith.constant 0 : index
    %15 = vector.load %arg6[%c0_12, %c0_13] : memref<8x128xf32, #tpu.memory_space<vmem>>, vector<6x128xf32>
    tpu.vector_store %arg6[%c0_12, %c0_13], %14 {strides = array<i32>} : memref<8x128xf32, #tpu.memory_space<vmem>>, vector<6x128xf32>,
    %c0_i32_14 = arith.constant 0 : i32
    %16 = arith.cmpi eq, %arg0, %c0_i32_14 : i32
    %17 = arith.extui %16 : i1 to i32
    %c0_i32_15 = arith.constant 0 : i32
    %18 = arith.cmpi ne, %17, %c0_i32_15 : i32
    scf.if %18 {
      %c0_16 = arith.constant 0 : index
      %c0_17 = arith.constant 0 : index
      %19 = vector.load %arg5[%c0_16, %c0_17] : memref<8x128xf32, #tpu.memory_space<vmem>>, vector<8x128xf32>
      %20 = vector.shape_cast %19 : vector<8x128xf32> to vector<1x8x128xf32>
      %cst = arith.constant dense<0.000000e+00> : vector<1xf32>
      %21 = vector.multi_reduction <add>, %20, %cst [1, 2] : vector<1x8x128xf32> to vector<1xf32>
      %22 = vector.shape_cast %21 : vector<1xf32> to vector<1x1x1xf32>
      %23 = vector.extract %22[0, 0, 0] : f32 from vector<1x1x1xf32>
      %cst_18 = arith.constant 0.00130208337 : f32
      %24 = arith.mulf %23, %cst_18 : f32
      %c0_19 = arith.constant 0 : index
      %25 = memref.load %arg4[%c0_19] : memref<2xf32, #tpu.memory_space<smem>>
      memref.store %24, %arg4[%c0_19] : memref<2xf32, #tpu.memory_space<smem>>
      %c0_20 = arith.constant 0 : index
      %c0_21 = arith.constant 0 : index
      %26 = vector.load %arg6[%c0_20, %c0_21] : memref<8x128xf32, #tpu.memory_space<vmem>>, vector<8x128xf32>
      %27 = vector.shape_cast %26 : vector<8x128xf32> to vector<1x8x128xf32>
      %cst_22 = arith.constant dense<0.000000e+00> : vector<1xf32>
      %28 = vector.multi_reduction <add>, %27, %cst_22 [1, 2] : vector<1x8x128xf32> to vector<1xf32>
      %29 = vector.shape_cast %28 : vector<1xf32> to vector<1x1x1xf32>
      %30 = vector.extract %29[0, 0, 0] : f32 from vector<1x1x1xf32>
      %cst_23 = arith.constant 0.00130208337 : f32
      %31 = arith.mulf %30, %cst_23 : f32
      %c1 = arith.constant 1 : index
      %32 = memref.load %arg4[%c1] : memref<2xf32, #tpu.memory_space<smem>>
      memref.store %31, %arg4[%c1] : memref<2xf32, #tpu.memory_space<smem>>
    } else {
    }
    return
  }
  func.func @transform_0(%arg0: i32) -> (i32, i32) {
    %c0_i32 = arith.constant 0 : i32
    %c0_i32_0 = arith.constant 0 : i32
    return %arg0, %c0_i32 : i32, i32
  }
  func.func @transform_1(%arg0: i32) -> (i32, i32) {
    %c0_i32 = arith.constant 0 : i32
    %c0_i32_0 = arith.constant 0 : i32
    return %arg0, %c0_i32 : i32, i32
  }
  func.func @transform_2(%arg0: i32) -> (i32, i32) {
    %c0_i32 = arith.constant 0 : i32
    %c0_i32_0 = arith.constant 0 : i32
    return %arg0, %c0_i32 : i32, i32
  }
  func.func @transform_3(%arg0: i32) -> i32 {
    %c0_i32 = arith.constant 0 : i32
    %c0_i32_0 = arith.constant 0 : i32
    return %c0_i32 : i32
  }
}

</mosaic_0001>

<llo_original>
// kernel: tpu_custom_call.1
$region0: #{tpu_custom_call.1}
  #allocation0 [shape = 'u32[]', space=smem, size = 0x4, offset = 0x4, fixed_abs, tag = 'smem constant byte address 0x4 - core index']
  #allocation1 [shape = 'u32[72,128]{1,0:T(1,128)}', space=vmem, size = 0x9000, scoped, tag = 'internal scratch']
  #allocation2 [shape = 'f32[8,128]{1,0:T(8,128)}', space=vmem, size = 0x1000, scoped, tag = 'scratch operand']
  #allocation3 [shape = 'f32[8,128]{1,0:T(8,128)}', space=vmem, size = 0x1000, scoped, tag = 'scratch operand']
  %s0 = inlined_call_operand.hbm [shape: f32[6,128], index: 0, kind: input, shape index: {}]
  %s1 = inlined_call_operand.hbm [shape: f32[6,128], index: 1, kind: input, shape index: {}]
  %s2 = inlined_call_operand.hbm [shape: f32[6,128], index: 2, kind: input, shape index: {}]
  %s3 = inlined_call_operand.hbm [shape: f32[2], index: 3, kind: output, shape index: {}]
  %s4 = sld [smem:[#allocation0]]
  $region42: #{tpu_custom_call.1} parent=0
    _
  %s6 = ssub.s32 1, %s4
  %s7 = scalar_select 0, %s6, %s4
  $region1: #{tpu_custom_call.1} parent=0
    #allocation4 [shape = 'u8[4096]{0}', space=vmem, size = 0x1000, scoped, tag = 'input window, operand 0, single buffered']
    #allocation5 [shape = 's32[1]{0}', space=sflag, size = 0x4, scoped, tag = 'scoped memory for tpu_custom_call.1']
    #allocation6 [shape = 's32[1]{0}', space=sflag, size = 0x4, scoped, tag = 'scoped memory for tpu_custom_call.1']
    #allocation7 [shape = 'u8[4096]{0}', space=vmem, size = 0x1000, scoped, tag = 'input window, operand 1, single buffered']
    #allocation8 [shape = 's32[1]{0}', space=sflag, size = 0x4, scoped, tag = 'scoped memory for tpu_custom_call.1']
    #allocation9 [shape = 'u8[4096]{0}', space=vmem, size = 0x1000, scoped, tag = 'input window, operand 2, single buffered']
    #allocation10 [shape = 'u8[512]{0}', space=smem, size = 0x200, scoped, tag = 'output window, operand 0, single buffered']
    %8 = vsyncpa [#allocation5], 0
    %9 = vsyncpa [#allocation8], 0
    %10 = vsyncpa [#allocation6], 0
    // Predicated region
    $region2: #{tpu_custom_call.1} parent=1 // pred_check
      _
    $region3: #{tpu_custom_call.1} parent=1 // pred_check_branch
      %12 = sbr.rel (0) target = $region5
    $region4: #{tpu_custom_call.1} parent=1 // pred_region
      %14 = vsyncadd [#allocation5], 0
      %s16 = sshll.u32 %s0, 4
      %s17 = int_to_ptr.hbm [resolvable:$true] %s16
      %s18 = sshll.u32 [#allocation4], 4
      %s19 = int_to_ptr.vmem [resolvable:$true] %s18
      %21 = dma.hbm_to_vmem [thread:$0]  %s17, 128, %s19, [#allocation5]
    $region5: #{tpu_custom_call.1} parent=1 // pred_fallthru
      _
    // Predicated region
    $region6: #{tpu_custom_call.1} parent=1 // pred_check
      _
    $region7: #{tpu_custom_call.1} parent=1 // pred_check_branch
      %23 = sbr.rel (0) target = $region9
    $region8: #{tpu_custom_call.1} parent=1 // pred_region
      %25 = vsyncadd [#allocation8], 0
      %s27 = sshll.u32 %s1, 4
      %s28 = int_to_ptr.hbm [resolvable:$true] %s27
      %s29 = sshll.u32 [#allocation7], 4
      %s30 = int_to_ptr.vmem [resolvable:$true] %s29
      %32 = dma.hbm_to_vmem [thread:$0]  %s28, 128, %s30, [#allocation8]
    $region9: #{tpu_custom_call.1} parent=1 // pred_fallthru
      _
    // Predicated region
    $region10: #{tpu_custom_call.1} parent=1 // pred_check
      _
    $region11: #{tpu_custom_call.1} parent=1 // pred_check_branch
      %34 = sbr.rel (0) target = $region13
    $region12: #{tpu_custom_call.1} parent=1 // pred_region
      %36 = vsyncadd [#allocation8], 0
      %s38 = sshll.u32 %s2, 4
      %s39 = int_to_ptr.hbm [resolvable:$true] %s38
      %s40 = sshll.u32 [#allocation9], 4
      %s41 = int_to_ptr.vmem [resolvable:$true] %s40
      %43 = dma.hbm_to_vmem [thread:$0]  %s39, 128, %s41, [#allocation8]
    $region13: #{tpu_custom_call.1} parent=1 // pred_fallthru
      _
    // Predicated region
    $region14: #{tpu_custom_call.1} parent=1 // pred_check
      _
    $region15: #{tpu_custom_call.1} parent=1 // pred_check_branch
      %45 = sbr.rel (0) target = $region17
    $region16: #{tpu_custom_call.1} parent=1 // pred_region
      %47 = dma.done [#allocation5], 128
    $region17: #{tpu_custom_call.1} parent=1 // pred_fallthru
      _
    // Predicated region
    $region18: #{tpu_custom_call.1} parent=1 // pred_check
      _
    $region19: #{tpu_custom_call.1} parent=1 // pred_check_branch
      %49 = sbr.rel (0) target = $region21
    $region20: #{tpu_custom_call.1} parent=1 // pred_region
      %51 = dma.done [#allocation8], 128
    $region21: #{tpu_custom_call.1} parent=1 // pred_fallthru
      _
    // Predicated region
    $region22: #{tpu_custom_call.1} parent=1 // pred_check
      _
    $region23: #{tpu_custom_call.1} parent=1 // pred_check_branch
      %53 = sbr.rel (0) target = $region25
    $region24: #{tpu_custom_call.1} parent=1 // pred_region
      %55 = dma.done [#allocation8], 128
    $region25: #{tpu_custom_call.1} parent=1 // pred_fallthru
      _
    %p56 = scmp.eq.s32.totalorder 0, 0
    // Predicated region
    $region26: #{tpu_custom_call.1} parent=1 // pred_check
      %p57 = pneg %p56
    $region27: #{tpu_custom_call.1} parent=1 // pred_check_branch
      %59 = sbr.rel (%p57) target = $region29
    $region28: #{tpu_custom_call.1} parent=1 // pred_region
      %60 = vst [vmem:[#allocation2] sm:$0xff] 0.0
      %61 = vst [vmem:[#allocation3] sm:$0xff] 0.0
    $region29: #{tpu_custom_call.1} parent=1 // pred_fallthru
      _
    %v62 = vld [vmem:[#allocation9] sm:$0x3f]
    %v63 = vld [vmem:[#allocation4] sm:$0x3f]
    %v64 = vsub.f32 %v63, %v62
    %v65 = vmul.f32 %v64, %v64
    %v66 = vld [vmem:[#allocation2] sm:$0x3f]
    %v67 = vadd.f32 %v66, %v65
    %68 = vst [vmem:[#allocation2] sm:$0x3f] %v67
    %v69 = vld [vmem:[#allocation7] sm:$0x3f]
    %v70 = vsub.f32 %v69, %v62
    %v71 = vmul.f32 %v70, %v70
    %v72 = vld [vmem:[#allocation3] sm:$0x3f]
    %v73 = vadd.f32 %v72, %v71
    %74 = vst [vmem:[#allocation3] sm:$0x3f] %v73
    // Predicated region
    $region30: #{tpu_custom_call.1} parent=1 // pred_check
      %p75 = pneg %p56
    $region31: #{tpu_custom_call.1} parent=1 // pred_check_branch
      %77 = sbr.rel (%p75) target = $region33
    $region32: #{tpu_custom_call.1} parent=1 // pred_region
      %v78 = vld [vmem:[#allocation2] sm:$0xff]
      %79 = vadd.xlane.f32.xlu0 %v78
      %v80 = vpop.xlane.xlu0 %79
      %v81 = vrot.slane %v80, 4
      %v82 = vadd.f32 %v80, %v81
      %v83 = vrot.slane %v82, 2
      %v84 = vadd.f32 %v82, %v83
      %v85 = vrot.slane %v84, 1
      %v86 = vadd.f32 %v84, %v85
      %s87 = vtos %v86
      %s88 = smul.f32 %s87, 0.0013020834
      %s89 = scalar_lea.smem [#allocation10], 0
      %90 = sst [smem:[%s89]] %s88
      %v91 = vld [vmem:[#allocation3] sm:$0xff]
      %92 = vadd.xlane.f32.xlu0 %v91
      %v93 = vpop.xlane.xlu0 %92
      %v94 = vrot.slane %v93, 4
      %v95 = vadd.f32 %v93, %v94
      %v96 = vrot.slane %v95, 2
      %v97 = vadd.f32 %v95, %v96
      %v98 = vrot.slane %v97, 1
      %v99 = vadd.f32 %v97, %v98
      %s100 = vtos %v99
      %s101 = smul.f32 %s100, 0.0013020834
      %s102 = scalar_lea.smem [#allocation10], 1
      %103 = sst [smem:[%s102]] %s101
    $region33: #{tpu_custom_call.1} parent=1 // pred_fallthru
      _
    // Predicated region
    $region34: #{tpu_custom_call.1} parent=1 // pred_check
      _
    $region35: #{tpu_custom_call.1} parent=1 // pred_check_branch
      %105 = sbr.rel (0) target = $region37
    $region36: #{tpu_custom_call.1} parent=1 // pred_region
      %107 = vsyncadd [#allocation6], 0
      %s109 = sshll.u32 %s3, 4
      %s110 = int_to_ptr.hbm [resolvable:$true] %s109
      %112 = dma.smem_to_hbm [#allocation10], 16, %s110, [#allocation6]
    $region37: #{tpu_custom_call.1} parent=1 // pred_fallthru
      _
    // Predicated region
    $region38: #{tpu_custom_call.1} parent=1 // pred_check
      _
    $region39: #{tpu_custom_call.1} parent=1 // pred_check_branch
      %114 = sbr.rel (0) target = $region41
    $region40: #{tpu_custom_call.1} parent=1 // pred_region
      %116 = dma.done [#allocation6], 16
    $region41: #{tpu_custom_call.1} parent=1 // pred_fallthru
      _
    %117 = sfence
    %118 = vsyncpa [#allocation5], 1
    %119 = vsyncpa [#allocation8], 1
    %120 = vsyncpa [#allocation6], 1

</llo_original>
